<compile_context>
chip_gen: v7x
topology: tpu7x:2x2x1
jax: 0.10.0
libtpu: 0.0.40
codegen_flags: <defaults>
</compile_context>

<pallas_src>
import jax
import jax.numpy as jnp
import numpy as np
from jax.experimental import pallas as pl
from jax.experimental.pallas import tpu as pltpu


# ----------------------------------------------------------------------------
# Fused kernel: [Linear+tanh] -> L x [Conv1d(k=3,p=1) + ReLU + eval-BN]
# One grid step = one batch element's full sequence, resident in VMEM.
# ----------------------------------------------------------------------------
def _fused_sentence_cnn_kernel(wr_ref, w2c_ref, w2cb_ref, cw_ref, cb_ref,
                               scale_ref, shift_ref, o_ref):
    S, C = o_ref.shape                      # (seq, padded channels)

    # word2cnn Linear + tanh  (bf16 MXU inputs, f32 accumulate, f32 epilogue)
    x = jnp.tanh(
        jnp.dot(wr_ref[...], w2c_ref[...], preferred_element_type=jnp.float32)
        + w2cb_ref[...]
    )                                        # (S, C) f32

    row = jax.lax.broadcasted_iota(jnp.int32, (S, C), 0)

    n_layers = cw_ref.shape[0]               # static -> Python unroll
    for l in range(n_layers):
        # Seq halo via XLU roll + mask (no HBM pad, no unaligned sublane slices).
        prev = jnp.where(row == 0,     0.0, pltpu.roll(x, shift=1,     axis=0))
        nxt  = jnp.where(row == S - 1, 0.0, pltpu.roll(x, shift=S - 1, axis=0))
        # im2col: lane-aligned concat -> one K=3C matmul on the MXU.
        xc = jnp.concatenate([prev, x, nxt], axis=1).astype(jnp.bfloat16)  # (S, 3C)
        acc = jnp.dot(xc, cw_ref[l], preferred_element_type=jnp.float32) + cb_ref[l]
        acc = jnp.maximum(acc, 0.0)                      # ReLU; Dropout = identity (eval)
        x = acc * scale_ref[l] + shift_ref[l]            # folded eval-mode BatchNorm1d

    o_ref[...] = x


def sentence_rep_forward(params, word_inputs, word_seq_lengths,
                         char_inputs, char_seq_lengths, char_seq_recover):
    """CNN branch of SentenceRep.forward (use_char=False). Returns (B, S, hidden_dim)."""
    del word_seq_lengths, char_inputs, char_seq_lengths, char_seq_recover  # CNN branch ignores them

    # WordRep: word-embedding lookup (glue JAX gather); cast to bf16 for the MXU path.
    wr = jnp.take(params["embedding"], word_inputs, axis=0).astype(jnp.bfloat16)  # (B,S,Ep)
    B, S, Ep = wr.shape
    Cp = params["w2c_w"].shape[1]
    L = params["conv_w"].shape[0]
    H = params["hidden_dim"]

    flops = B * (2 * S * Ep * Cp + L * 2 * S * (3 * Cp) * Cp)
    bytes_accessed = (
        wr.size * 2
        + params["w2c_w"].size * 2 + params["conv_w"].size * 2
        + (params["w2c_b"].size + params["conv_b"].size
           + params["bn_scale"].size + params["bn_shift"].size) * 4
        + B * S * Cp * 4
    )

    out = pl.pallas_call(
        _fused_sentence_cnn_kernel,
        out_shape=jax.ShapeDtypeStruct((B, S, Cp), jnp.float32),
        grid_spec=pl.GridSpec(
            grid=(B,),
            in_specs=[
                pl.BlockSpec((None, S, Ep), lambda b: (b, 0, 0)),       # word_represent
                pl.BlockSpec((Ep, Cp), lambda b: (0, 0)),               # word2cnn weight (bf16)
                pl.BlockSpec((1, Cp), lambda b: (0, 0)),                # word2cnn bias
                pl.BlockSpec((L, 3 * Cp, Cp), lambda b: (0, 0, 0)),     # stacked im2col conv weights
                pl.BlockSpec((L, 1, Cp), lambda b: (0, 0, 0)),          # stacked conv bias
                pl.BlockSpec((L, 1, Cp), lambda b: (0, 0, 0)),          # stacked folded-BN scale
                pl.BlockSpec((L, 1, Cp), lambda b: (0, 0, 0)),          # stacked folded-BN shift
            ],
            out_specs=pl.BlockSpec((None, S, Cp), lambda b: (b, 0, 0)),
        ),
        compiler_params=pltpu.CompilerParams(
            dimension_semantics=("parallel",),
            vmem_limit_bytes=32 * 1024 * 1024,
        ),
        cost_estimate=pl.CostEstimate(
            flops=int(flops),
            transcendentals=int(B * S * Cp),
            bytes_accessed=int(bytes_accessed),
        ),
    )(wr, params["w2c_w"], params["w2c_b"], params["conv_w"],
      params["conv_b"], params["bn_scale"], params["bn_shift"])

    return out[:, :, :H]   # drop channel padding


# ----------------------------------------------------------------------------
# Deterministic parameter construction (channel-padded, BN-folded, layer-stacked)
# ----------------------------------------------------------------------------
def make_params(key, vocab, word_emb_dim, hidden_dim, cnn_layer, lane=128):
    E, H = word_emb_dim, hidden_dim
    Ep = ((E + lane - 1) // lane) * lane
    Cp = ((H + lane - 1) // lane) * lane
    eps = 1e-5

    keys = jax.random.split(key, 3 + 4 * cnn_layer)
    emb = 0.1 * jax.random.normal(keys[0], (vocab, E), jnp.float32)
    emb = jnp.pad(emb, ((0, 0), (0, Ep - E)))

    w2c = 0.1 * jax.random.normal(keys[1], (E, H), jnp.float32)
    w2c = jnp.pad(w2c, ((0, Ep - E), (0, Cp - H))).astype(jnp.bfloat16)
    w2cb = jnp.pad(0.1 * jax.random.normal(keys[2], (H,), jnp.float32),
                   (0, Cp - H)).reshape(1, Cp)

    conv_w, conv_b, bn_scale, bn_shift = [], [], [], []
    for i in range(cnn_layer):
        k0, k1, k2, k3 = keys[3 + 4 * i: 3 + 4 * (i + 1)]
        # PyTorch Conv1d weight: (C_out, C_in, 3); zero-pad channels, then build
        # im2col layout (3*C_in, C_out) with row block k*C_in + c_in <-> tap k.
        w_t = 0.1 * jax.random.normal(k0, (H, H, 3), jnp.float32)
        w_t = jnp.pad(w_t, ((0, Cp - H), (0, Cp - H), (0, 0)))
        w_im2col = jnp.transpose(w_t, (2, 1, 0)).reshape(3 * Cp, Cp)
        conv_w.append(w_im2col.astype(jnp.bfloat16))

        b = jnp.pad(0.1 * jax.random.normal(k1, (H,), jnp.float32), (0, Cp - H))
        conv_b.append(b.reshape(1, Cp))

        gamma = 1.0 + 0.05 * jax.random.normal(k2, (H,), jnp.float32)
        beta = 0.05 * jax.random.normal(k3, (H,), jnp.float32)
        mean = jnp.zeros((H,), jnp.float32)
        var = jnp.ones((H,), jnp.float32)
        scale = gamma / jnp.sqrt(var + eps)            # folded eval-mode BN
        shift = beta - mean * scale
        bn_scale.append(jnp.pad(scale, (0, Cp - H)).reshape(1, Cp))
        bn_shift.append(jnp.pad(shift, (0, Cp - H)).reshape(1, Cp))

    return {
        "embedding": emb,                      # (V, Ep)     f32
        "w2c_w": w2c,                          # (Ep, Cp)    bf16
        "w2c_b": w2cb,                         # (1, Cp)     f32
        "conv_w": jnp.stack(conv_w),           # (L, 3Cp, Cp) bf16
        "conv_b": jnp.stack(conv_b),           # (L, 1, Cp)  f32
        "bn_scale": jnp.stack(bn_scale),       # (L, 1, Cp)  f32
        "bn_shift": jnp.stack(bn_shift),       # (L, 1, Cp)  f32
        "hidden_dim": H,
    }


# ----------------------------------------------------------------------------
# Pure-JAX reference (same numerics: bf16 matmul inputs, f32 accumulate)
# ----------------------------------------------------------------------------
def sentence_rep_reference(params, word_inputs):
    wr = jnp.take(params["embedding"], word_inputs, axis=0).astype(jnp.bfloat16)
    x = jnp.tanh(jnp.einsum("bse,eh->bsh", wr, params["w2c_w"],
                            preferred_element_type=jnp.float32) + params["w2c_b"])
    for l in range(params["conv_w"].shape[0]):
        xp = jnp.pad(x, ((0, 0), (1, 1), (0, 0)))
        xc = jnp.concatenate([xp[:, :-2], xp[:, 1:-1], xp[:, 2:]],
                             axis=-1).astype(jnp.bfloat16)
        acc = jnp.einsum("bsk,kh->bsh", xc, params["conv_w"][l],
                         preferred_element_type=jnp.float32) + params["conv_b"][l]
        acc = jnp.maximum(acc, 0.0)
        x = acc * params["bn_scale"][l] + params["bn_shift"][l]
    return x[:, :, :params["hidden_dim"]]


if __name__ == "__main__":
    B, S, VOCAB = 2, 16, 50
    WORD_EMB_DIM = 32         # data.word_emb_dim
    HIDDEN_DIM = 32           # data.global_hidden_dim
    CNN_LAYER = 2             # data.HP_cnn_layer

    key = jax.random.PRNGKey(0)
    kp, kw = jax.random.split(key)
    params = make_params(kp, VOCAB, WORD_EMB_DIM, HIDDEN_DIM, CNN_LAYER)

    word_inputs = jax.random.randint(kw, (B, S), 0, VOCAB, dtype=jnp.int32)
    word_seq_lengths = jnp.full((B,), S, dtype=jnp.int32)       # unused (CNN branch)
    char_inputs = jnp.zeros((B * S, 4), dtype=jnp.int32)        # unused (use_char=False)
    char_seq_lengths = jnp.full((B * S,), 4, dtype=jnp.int32)   # unused
    char_seq_recover = jnp.arange(B * S, dtype=jnp.int32)       # unused

    out = sentence_rep_forward(params, word_inputs, word_seq_lengths,
                               char_inputs, char_seq_lengths, char_seq_recover)
    out = jax.block_until_ready(out)
    assert out.shape == (B, S, HIDDEN_DIM) and out.dtype == jnp.float32

    ref = jax.block_until_ready(sentence_rep_reference(params, word_inputs))
    np.testing.assert_allclose(np.asarray(out), np.asarray(ref), rtol=5e-3, atol=5e-3)

    print("KERNEL_OK")
</pallas_src>

<mosaic_0001>
module attributes {stable_mosaic.version = 11 : i64} {
  func.func @_fused_sentence_cnn_kernel(%arg0: i32, %arg1: memref<1x16x128xbf16, #tpu.memory_space<vmem>>, %arg2: memref<128x128xbf16, #tpu.memory_space<vmem>>, %arg3: memref<1x128xf32, #tpu.memory_space<vmem>>, %arg4: memref<2x384x128xbf16, #tpu.memory_space<vmem>>, %arg5: memref<2x1x128xf32, #tpu.memory_space<vmem>>, %arg6: memref<2x1x128xf32, #tpu.memory_space<vmem>>, %arg7: memref<2x1x128xf32, #tpu.memory_space<vmem>>, %arg8: memref<1x16x128xf32, #tpu.memory_space<vmem>>) attributes {dimension_semantics = [#tpu.dimension_semantics<parallel>], iteration_bounds = array<i64: 2>, scalar_prefetch = 0 : i64, scratch_operands = 0 : i64, tpu.core_type = #tpu.core_type<tc>, window_params = [{transform_indices = @transform_0, window_bounds = array<i64: 1, 16, 128>}, {pipeline_mode = #tpu.pipeline_mode<synchronous>, transform_indices = @transform_1, window_bounds = array<i64: 128, 128>}, {pipeline_mode = #tpu.pipeline_mode<synchronous>, transform_indices = @transform_2, window_bounds = array<i64: 1, 128>}, {pipeline_mode = #tpu.pipeline_mode<synchronous>, transform_indices = @transform_3, window_bounds = array<i64: 2, 384, 128>}, {pipeline_mode = #tpu.pipeline_mode<synchronous>, transform_indices = @transform_4, window_bounds = array<i64: 2, 1, 128>}, {pipeline_mode = #tpu.pipeline_mode<synchronous>, transform_indices = @transform_5, window_bounds = array<i64: 2, 1, 128>}, {pipeline_mode = #tpu.pipeline_mode<synchronous>, transform_indices = @transform_6, window_bounds = array<i64: 2, 1, 128>}, {transform_indices = @transform_7, window_bounds = array<i64: 1, 16, 128>}]} {
    %c0 = arith.constant 0 : index
    %c0_0 = arith.constant 0 : index
    %c0_1 = arith.constant 0 : index
    %0 = vector.load %arg1[%c0, %c0_0, %c0_1] : memref<1x16x128xbf16, #tpu.memory_space<vmem>>, vector<1x16x128xbf16>
    %1 = vector.shape_cast %0 : vector<1x16x128xbf16> to vector<16x128xbf16>
    %c0_2 = arith.constant 0 : index
    %c0_3 = arith.constant 0 : index
    %2 = vector.load %arg2[%c0_2, %c0_3] : memref<128x128xbf16, #tpu.memory_space<vmem>>, vector<128x128xbf16>
    %cst = arith.constant dense<0.000000e+00> : vector<16x128xf32>
    %3 = tpu.matmul %1, %2, %cst {dimension_numbers = #tpu.dot_dimension_numbers<[1], [0], [0], [1], [0, 0, 1, 1], [], []>} : vector<16x128xbf16>, vector<128x128xbf16>, vector<16x128xf32> -> vector<16x128xf32>
    %c0_4 = arith.constant 0 : index
    %c0_5 = arith.constant 0 : index
    %4 = vector.load %arg3[%c0_4, %c0_5] : memref<1x128xf32, #tpu.memory_space<vmem>>, vector<1x128xf32>
    %5 = vector.broadcast %4 : vector<1x128xf32> to vector<16x128xf32>
    %6 = arith.addf %3, %5 : vector<16x128xf32>
    %7 = math.tanh %6 : vector<16x128xf32>
    %8 = tpu.iota {dimensions = array<i32: 0>} : vector<16x128xi32>
    %c0_i32 = arith.constant 0 : i32
    %9 = vector.broadcast %c0_i32 : i32 to vector<16x128xi32>
    %10 = arith.cmpi eq, %8, %9 : vector<16x128xi32>
    %c1_i32 = arith.constant 1 : i32
    %11 = tpu.dynamic_rotate %7 by %c1_i32 dim 0 : vector<16x128xf32>, i32 -> vector<16x128xf32>
    %cst_6 = arith.constant 0.000000e+00 : f32
    %12 = vector.broadcast %cst_6 : f32 to vector<16x128xf32>
    %13 = arith.select %10, %12, %11 : vector<16x128xi1>, vector<16x128xf32>
    %c15_i32 = arith.constant 15 : i32
    %14 = vector.broadcast %c15_i32 : i32 to vector<16x128xi32>
    %15 = arith.cmpi eq, %8, %14 : vector<16x128xi32>
    %c15_i32_7 = arith.constant 15 : i32
    %16 = tpu.dynamic_rotate %7 by %c15_i32_7 dim 0 : vector<16x128xf32>, i32 -> vector<16x128xf32>
    %cst_8 = arith.constant 0.000000e+00 : f32
    %17 = vector.broadcast %cst_8 : f32 to vector<16x128xf32>
    %18 = arith.select %15, %17, %16 : vector<16x128xi1>, vector<16x128xf32>
    %19 = tpu.concatenate %13, %7, %18 in 1 : vector<16x128xf32>, vector<16x128xf32>, vector<16x128xf32> -> vector<16x384xf32>
    %20 = arith.truncf %19 : vector<16x384xf32> to vector<16x384xbf16>
    %c0_9 = arith.constant 0 : index
    %c0_10 = arith.constant 0 : index
    %c0_11 = arith.constant 0 : index
    %21 = vector.load %arg4[%c0_9, %c0_10, %c0_11] : memref<2x384x128xbf16, #tpu.memory_space<vmem>>, vector<1x384x128xbf16>
    %22 = vector.shape_cast %21 : vector<1x384x128xbf16> to vector<384x128xbf16>
    %cst_12 = arith.constant dense<0.000000e+00> : vector<16x128xf32>
    %23 = tpu.matmul %20, %22, %cst_12 {dimension_numbers = #tpu.dot_dimension_numbers<[1], [0], [0], [1], [0, 0, 1, 1], [], []>} : vector<16x384xbf16>, vector<384x128xbf16>, vector<16x128xf32> -> vector<16x128xf32>
    %c0_13 = arith.constant 0 : index
    %c0_14 = arith.constant 0 : index
    %c0_15 = arith.constant 0 : index
    %24 = vector.load %arg5[%c0_13, %c0_14, %c0_15] : memref<2x1x128xf32, #tpu.memory_space<vmem>>, vector<1x1x128xf32>
    %25 = vector.shape_cast %24 : vector<1x1x128xf32> to vector<1x128xf32>
    %26 = vector.broadcast %25 : vector<1x128xf32> to vector<16x128xf32>
    %27 = arith.addf %23, %26 : vector<16x128xf32>
    %cst_16 = arith.constant 0.000000e+00 : f32
    %28 = vector.broadcast %cst_16 : f32 to vector<16x128xf32>
    %29 = arith.maximumf %27, %28 : vector<16x128xf32>
    %c0_17 = arith.constant 0 : index
    %c0_18 = arith.constant 0 : index
    %c0_19 = arith.constant 0 : index
    %30 = vector.load %arg6[%c0_17, %c0_18, %c0_19] : memref<2x1x128xf32, #tpu.memory_space<vmem>>, vector<1x1x128xf32>
    %31 = vector.shape_cast %30 : vector<1x1x128xf32> to vector<1x128xf32>
    %32 = vector.broadcast %31 : vector<1x128xf32> to vector<16x128xf32>
    %33 = arith.mulf %29, %32 : vector<16x128xf32>
    %c0_20 = arith.constant 0 : index
    %c0_21 = arith.constant 0 : index
    %c0_22 = arith.constant 0 : index
    %34 = vector.load %arg7[%c0_20, %c0_21, %c0_22] : memref<2x1x128xf32, #tpu.memory_space<vmem>>, vector<1x1x128xf32>
    %35 = vector.shape_cast %34 : vector<1x1x128xf32> to vector<1x128xf32>
    %36 = vector.broadcast %35 : vector<1x128xf32> to vector<16x128xf32>
    %37 = arith.addf %33, %36 : vector<16x128xf32>
    %c0_i32_23 = arith.constant 0 : i32
    %38 = vector.broadcast %c0_i32_23 : i32 to vector<16x128xi32>
    %39 = arith.cmpi eq, %8, %38 : vector<16x128xi32>
    %c1_i32_24 = arith.constant 1 : i32
    %40 = tpu.dynamic_rotate %37 by %c1_i32_24 dim 0 : vector<16x128xf32>, i32 -> vector<16x128xf32>
    %cst_25 = arith.constant 0.000000e+00 : f32
    %41 = vector.broadcast %cst_25 : f32 to vector<16x128xf32>
    %42 = arith.select %39, %41, %40 : vector<16x128xi1>, vector<16x128xf32>
    %c15_i32_26 = arith.constant 15 : i32
    %43 = vector.broadcast %c15_i32_26 : i32 to vector<16x128xi32>
    %44 = arith.cmpi eq, %8, %43 : vector<16x128xi32>
    %c15_i32_27 = arith.constant 15 : i32
    %45 = tpu.dynamic_rotate %37 by %c15_i32_27 dim 0 : vector<16x128xf32>, i32 -> vector<16x128xf32>
    %cst_28 = arith.constant 0.000000e+00 : f32
    %46 = vector.broadcast %cst_28 : f32 to vector<16x128xf32>
    %47 = arith.select %44, %46, %45 : vector<16x128xi1>, vector<16x128xf32>
    %48 = tpu.concatenate %42, %37, %47 in 1 : vector<16x128xf32>, vector<16x128xf32>, vector<16x128xf32> -> vector<16x384xf32>
    %49 = arith.truncf %48 : vector<16x384xf32> to vector<16x384xbf16>
    %c1 = arith.constant 1 : index
    %c0_29 = arith.constant 0 : index
    %c0_30 = arith.constant 0 : index
    %50 = vector.load %arg4[%c1, %c0_29, %c0_30] : memref<2x384x128xbf16, #tpu.memory_space<vmem>>, vector<1x384x128xbf16>
    %51 = vector.shape_cast %50 : vector<1x384x128xbf16> to vector<384x128xbf16>
    %cst_31 = arith.constant dense<0.000000e+00> : vector<16x128xf32>
    %52 = tpu.matmul %49, %51, %cst_31 {dimension_numbers = #tpu.dot_dimension_numbers<[1], [0], [0], [1], [0, 0, 1, 1], [], []>} : vector<16x384xbf16>, vector<384x128xbf16>, vector<16x128xf32> -> vector<16x128xf32>
    %c1_32 = arith.constant 1 : index
    %c0_33 = arith.constant 0 : index
    %c0_34 = arith.constant 0 : index
    %53 = vector.load %arg5[%c1_32, %c0_33, %c0_34] : memref<2x1x128xf32, #tpu.memory_space<vmem>>, vector<1x1x128xf32>
    %54 = vector.shape_cast %53 : vector<1x1x128xf32> to vector<1x128xf32>
    %55 = vector.broadcast %54 : vector<1x128xf32> to vector<16x128xf32>
    %56 = arith.addf %52, %55 : vector<16x128xf32>
    %cst_35 = arith.constant 0.000000e+00 : f32
    %57 = vector.broadcast %cst_35 : f32 to vector<16x128xf32>
    %58 = arith.maximumf %56, %57 : vector<16x128xf32>
    %c1_36 = arith.constant 1 : index
    %c0_37 = arith.constant 0 : index
    %c0_38 = arith.constant 0 : index
    %59 = vector.load %arg6[%c1_36, %c0_37, %c0_38] : memref<2x1x128xf32, #tpu.memory_space<vmem>>, vector<1x1x128xf32>
    %60 = vector.shape_cast %59 : vector<1x1x128xf32> to vector<1x128xf32>
    %61 = vector.broadcast %60 : vector<1x128xf32> to vector<16x128xf32>
    %62 = arith.mulf %58, %61 : vector<16x128xf32>
    %c1_39 = arith.constant 1 : index
    %c0_40 = arith.constant 0 : index
    %c0_41 = arith.constant 0 : index
    %63 = vector.load %arg7[%c1_39, %c0_40, %c0_41] : memref<2x1x128xf32, #tpu.memory_space<vmem>>, vector<1x1x128xf32>
    %64 = vector.shape_cast %63 : vector<1x1x128xf32> to vector<1x128xf32>
    %65 = vector.broadcast %64 : vector<1x128xf32> to vector<16x128xf32>
    %66 = arith.addf %62, %65 : vector<16x128xf32>
    %c0_42 = arith.constant 0 : index
    %c0_43 = arith.constant 0 : index
    %c0_44 = arith.constant 0 : index
    %67 = vector.load %arg8[%c0_42, %c0_43, %c0_44] : memref<1x16x128xf32, #tpu.memory_space<vmem>>, vector<1x16x128xf32>
    %68 = vector.shape_cast %67 : vector<1x16x128xf32> to vector<16x128xf32>
    %69 = vector.shape_cast %66 : vector<16x128xf32> to vector<1x16x128xf32>
    tpu.vector_store %arg8[%c0_42, %c0_43, %c0_44], %69 {strides = array<i32>} : memref<1x16x128xf32, #tpu.memory_space<vmem>>, vector<1x16x128xf32>,
    return
  }
  func.func @transform_0(%arg0: i32) -> (i32, i32, i32) {
    %c0_i32 = arith.constant 0 : i32
    %c0_i32_0 = arith.constant 0 : i32
    %c0_i32_1 = arith.constant 0 : i32
    return %arg0, %c0_i32, %c0_i32_0 : i32, i32, i32
  }
  func.func @transform_1(%arg0: i32) -> (i32, i32) {
    %c0_i32 = arith.constant 0 : i32
    %c0_i32_0 = arith.constant 0 : i32
    %c0_i32_1 = arith.constant 0 : i32
    return %c0_i32, %c0_i32_0 : i32, i32
  }
  func.func @transform_2(%arg0: i32) -> (i32, i32) {
    %c0_i32 = arith.constant 0 : i32
    %c0_i32_0 = arith.constant 0 : i32
    %c0_i32_1 = arith.constant 0 : i32
    return %c0_i32, %c0_i32_0 : i32, i32
  }
  func.func @transform_3(%arg0: i32) -> (i32, i32, i32) {
    %c0_i32 = arith.constant 0 : i32
    %c0_i32_0 = arith.constant 0 : i32
    %c0_i32_1 = arith.constant 0 : i32
    %c0_i32_2 = arith.constant 0 : i32
    return %c0_i32, %c0_i32_0, %c0_i32_1 : i32, i32, i32
  }
  func.func @transform_4(%arg0: i32) -> (i32, i32, i32) {
    %c0_i32 = arith.constant 0 : i32
    %c0_i32_0 = arith.constant 0 : i32
    %c0_i32_1 = arith.constant 0 : i32
    %c0_i32_2 = arith.constant 0 : i32
    return %c0_i32, %c0_i32_0, %c0_i32_1 : i32, i32, i32
  }
  func.func @transform_5(%arg0: i32) -> (i32, i32, i32) {
    %c0_i32 = arith.constant 0 : i32
    %c0_i32_0 = arith.constant 0 : i32
    %c0_i32_1 = arith.constant 0 : i32
    %c0_i32_2 = arith.constant 0 : i32
    return %c0_i32, %c0_i32_0, %c0_i32_1 : i32, i32, i32
  }
  func.func @transform_6(%arg0: i32) -> (i32, i32, i32) {
    %c0_i32 = arith.constant 0 : i32
    %c0_i32_0 = arith.constant 0 : i32
    %c0_i32_1 = arith.constant 0 : i32
    %c0_i32_2 = arith.constant 0 : i32
    return %c0_i32, %c0_i32_0, %c0_i32_1 : i32, i32, i32
  }
  func.func @transform_7(%arg0: i32) -> (i32, i32, i32) {
    %c0_i32 = arith.constant 0 : i32
    %c0_i32_0 = arith.constant 0 : i32
    %c0_i32_1 = arith.constant 0 : i32
    return %arg0, %c0_i32, %c0_i32_0 : i32, i32, i32
  }
}

</mosaic_0001>

<llo_original>
// kernel: tpu_custom_call.1
$region0: #{tpu_custom_call.1}
  #allocation0 [shape = 'u32[]', space=smem, size = 0x4, offset = 0x4, fixed_abs, tag = 'smem constant byte address 0x4 - core index']
  #allocation1 [shape = 'u32[144,128]{1,0:T(1,128)}', space=vmem, size = 0x12000, scoped, tag = 'internal scratch']
  %s0 = inlined_call_operand.hbm [shape: bf16[2,16,128], index: 0, kind: input, shape index: {}]
  %s1 = inlined_call_operand.hbm [shape: bf16[128,128], index: 1, kind: input, shape index: {}]
  %s2 = inlined_call_operand.vmem [shape: f32[1,128], index: 2, kind: input, shape index: {}]
  %s3 = inlined_call_operand.hbm [shape: bf16[2,384,128], index: 3, kind: input, shape index: {}]
  %s4 = inlined_call_operand.vmem [shape: f32[2,1,128], index: 4, kind: input, shape index: {}]
  %s5 = inlined_call_operand.vmem [shape: f32[2,1,128], index: 5, kind: input, shape index: {}]
  %s6 = inlined_call_operand.vmem [shape: f32[2,1,128], index: 6, kind: input, shape index: {}]
  %s7 = inlined_call_operand.hbm [shape: f32[2,16,128], index: 7, kind: output, shape index: {}]
  %s8 = sld [smem:[#allocation0]]
  $region73: #{tpu_custom_call.1} parent=0
    _
  %s10 = ssub.s32 1, %s8
  %s11 = scalar_select 0, %s10, %s8
  $region1: #{tpu_custom_call.1} parent=0
    #allocation2 [shape = 'u8[8192]{0}', space=vmem, size = 0x2000, scoped, tag = 'input window, operand 0']
    #allocation3 [shape = 's32[2]{0}', space=sflag, size = 0x8, scoped, tag = 'scoped memory for tpu_custom_call.1']
    #allocation4 [shape = 's32[2]{0}', space=sflag, size = 0x8, scoped, tag = 'scoped memory for tpu_custom_call.1']
    #allocation5 [shape = 'u8[32768]{0}', space=vmem, size = 0x8000, scoped, tag = 'input window, operand 1, single buffered']
    #allocation6 [shape = 's32[1]{0}', space=sflag, size = 0x4, scoped, tag = 'scoped memory for tpu_custom_call.1']
    #allocation7 [shape = 'u8[196608]{0}', space=vmem, size = 0x30000, scoped, tag = 'input window, operand 3, single buffered']
    #allocation8 [shape = 'u8[16384]{0}', space=vmem, size = 0x4000, scoped, tag = 'output window, operand 0']
    %12 = vsyncpa [#allocation3], 0
    %s13 = scalar_lea.sflag [#allocation3], 1
    %14 = vsyncpa %s13, 0
    %15 = vsyncpa [#allocation6], 0
    %16 = vsyncpa [#allocation4], 0
    %s17 = scalar_lea.sflag [#allocation4], 1
    %18 = vsyncpa %s17, 0
    loop: start=0, step=1, limit=4
    $region2: #{tpu_custom_call.1} parent=1 // loop_pre_header
      _
    $region3: #{tpu_custom_call.1} parent=1 // loop_header
      %s20 = sphi 0, %s24
      %p21 = scmp.ge.s32.totalorder %s20, 4
      %s30 = sphi 0, %s32
      %s33 = sphi 0, %s30
      %s34 = sphi 0, %s33
      %s50 = sphi 0, %s34
      %s54 = sphi 0, %s54
      %s56 = sphi 0, %s54
      %s57 = sphi 0, %s56
      %s71 = sphi 0, %s57
      %s75 = sphi 0, %s75
      %s77 = sphi 0, %s75
      %s78 = sphi 0, %s77
      %s92 = sphi 0, %s78
      %s96 = sphi 0, %s96
      %s98 = sphi 0, %s96
      %s99 = sphi 0, %s98
      %s113 = sphi 0, %s99
      %s117 = sphi 0, %s117
      %s119 = sphi 0, %s117
      %s120 = sphi 0, %s119
      %s134 = sphi 0, %s120
      %s138 = sphi 0, %s138
      %s140 = sphi 0, %s138
      %s141 = sphi 0, %s140
      %s155 = sphi 0, %s141
      %s159 = sphi 0, %s159
      %s161 = sphi 0, %s159
      %s162 = sphi 0, %s161
      %s176 = sphi 0, %s162
      %s182 = sphi 0, %s184
      %s185 = sphi 0, %s182
      %s186 = sphi 0, %s185
      %s202 = sphi 0, %s186
    $region4: #{tpu_custom_call.1} parent=1 // loop_header_branch
      %23 = sbr.rel (%p21) target = $region8
    $region5: #{tpu_custom_call.1} parent=1 // loop_body
      %s25 = ssub.s32 %s20, 1
      %s26 = ssub.s32 %s20, 2
      %s27 = sadd.s32 %s20, 1
      %s28 = ssub.s32 %s20, %s27
      %p29 = scmp.eq.s32.totalorder %s28, 0
      %s31 = sadd.s32 %s30, 1
      %s32 = scalar_select %p29, %s30, %s31
      %p35 = pneg %p29
      %p36 = scmp.eq.s32.totalorder %s20, 1
      %p37 = por %p35, %p36
      %p38 = scmp.ne.s32.totalorder %s30, %s33
      %p39 = scmp.eq.s32.totalorder %s20, 0
      %p40 = por %p38, %p39
      %p41 = scmp.ne.s32.totalorder %s30, %s33
      %p42 = scmp.eq.s32.totalorder %s25, 1
      %p43 = por %p41, %p42
      %p44 = scmp.ne.s32.totalorder %s33, %s34
      %p45 = scmp.eq.s32.totalorder %s25, 0
      %p46 = por %p44, %p45
      %p47 = scmp.ne.s32.totalorder %s33, %s34
      %p48 = scmp.eq.s32.totalorder %s26, 1
      %p49 = por %p47, %p48
      %p51 = scmp.ne.s32.totalorder %s34, %s50
      %p52 = scmp.eq.s32.totalorder %s26, 0
      %p53 = por %p51, %p52
      %s55 = sadd.s32 %s54, 1
      %p58 = scmp.eq.s32.totalorder %s20, 1
      %p59 = scmp.ne.s32.totalorder %s54, %s56
      %p60 = scmp.eq.s32.totalorder %s20, 0
      %p61 = por %p59, %p60
      %p62 = scmp.ne.s32.totalorder %s54, %s56
      %p63 = scmp.eq.s32.totalorder %s25, 1
      %p64 = por %p62, %p63
      %p65 = scmp.ne.s32.totalorder %s56, %s57
      %p66 = scmp.eq.s32.totalorder %s25, 0
      %p67 = por %p65, %p66
      %p68 = scmp.ne.s32.totalorder %s56, %s57
      %p69 = scmp.eq.s32.totalorder %s26, 1
      %p70 = por %p68, %p69
      %p72 = scmp.ne.s32.totalorder %s57, %s71
      %p73 = scmp.eq.s32.totalorder %s26, 0
      %p74 = por %p72, %p73
      %s76 = sadd.s32 %s75, 1
      %p79 = scmp.eq.s32.totalorder %s20, 1
      %p80 = scmp.ne.s32.totalorder %s75, %s77
      %p81 = scmp.eq.s32.totalorder %s20, 0
      %p82 = por %p80, %p81
      %p83 = scmp.ne.s32.totalorder %s75, %s77
      %p84 = scmp.eq.s32.totalorder %s25, 1
      %p85 = por %p83, %p84
      %p86 = scmp.ne.s32.totalorder %s77, %s78
      %p87 = scmp.eq.s32.totalorder %s25, 0
      %p88 = por %p86, %p87
      %p89 = scmp.ne.s32.totalorder %s77, %s78
      %p90 = scmp.eq.s32.totalorder %s26, 1
      %p91 = por %p89, %p90
      %p93 = scmp.ne.s32.totalorder %s78, %s92
      %p94 = scmp.eq.s32.totalorder %s26, 0
      %p95 = por %p93, %p94
      %s97 = sadd.s32 %s96, 1
      %p100 = scmp.eq.s32.totalorder %s20, 1
      %p101 = scmp.ne.s32.totalorder %s96, %s98
      %p102 = scmp.eq.s32.totalorder %s20, 0
      %p103 = por %p101, %p102
      %p104 = scmp.ne.s32.totalorder %s96, %s98
      %p105 = scmp.eq.s32.totalorder %s25, 1
      %p106 = por %p104, %p105
      %p107 = scmp.ne.s32.totalorder %s98, %s99
      %p108 = scmp.eq.s32.totalorder %s25, 0
      %p109 = por %p107, %p108
      %p110 = scmp.ne.s32.totalorder %s98, %s99
      %p111 = scmp.eq.s32.totalorder %s26, 1
      %p112 = por %p110, %p111
      %p114 = scmp.ne.s32.totalorder %s99, %s113
      %p115 = scmp.eq.s32.totalorder %s26, 0
      %p116 = por %p114, %p115
      %s118 = sadd.s32 %s117, 1
      %p121 = scmp.eq.s32.totalorder %s20, 1
      %p122 = scmp.ne.s32.totalorder %s117, %s119
      %p123 = scmp.eq.s32.totalorder %s20, 0
      %p124 = por %p122, %p123
      %p125 = scmp.ne.s32.totalorder %s117, %s119
      %p126 = scmp.eq.s32.totalorder %s25, 1
      %p127 = por %p125, %p126
      %p128 = scmp.ne.s32.totalorder %s119, %s120
      %p129 = scmp.eq.s32.totalorder %s25, 0
      %p130 = por %p128, %p129
      %p131 = scmp.ne.s32.totalorder %s119, %s120
      %p132 = scmp.eq.s32.totalorder %s26, 1
      %p133 = por %p131, %p132
      %p135 = scmp.ne.s32.totalorder %s120, %s134
      %p136 = scmp.eq.s32.totalorder %s26, 0
      %p137 = por %p135, %p136
      %s139 = sadd.s32 %s138, 1
      %p142 = scmp.eq.s32.totalorder %s20, 1
      %p143 = scmp.ne.s32.totalorder %s138, %s140
      %p144 = scmp.eq.s32.totalorder %s20, 0
      %p145 = por %p143, %p144
      %p146 = scmp.ne.s32.totalorder %s138, %s140
      %p147 = scmp.eq.s32.totalorder %s25, 1
      %p148 = por %p146, %p147
      %p149 = scmp.ne.s32.totalorder %s140, %s141
      %p150 = scmp.eq.s32.totalorder %s25, 0
      %p151 = por %p149, %p150
      %p152 = scmp.ne.s32.totalorder %s140, %s141
      %p153 = scmp.eq.s32.totalorder %s26, 1
      %p154 = por %p152, %p153
      %p156 = scmp.ne.s32.totalorder %s141, %s155
      %p157 = scmp.eq.s32.totalorder %s26, 0
      %p158 = por %p156, %p157
      %s160 = sadd.s32 %s159, 1
      %p163 = scmp.eq.s32.totalorder %s20, 1
      %p164 = scmp.ne.s32.totalorder %s159, %s161
      %p165 = scmp.eq.s32.totalorder %s20, 0
      %p166 = por %p164, %p165
      %p167 = scmp.ne.s32.totalorder %s159, %s161
      %p168 = scmp.eq.s32.totalorder %s25, 1
      %p169 = por %p167, %p168
      %p170 = scmp.ne.s32.totalorder %s161, %s162
      %p171 = scmp.eq.s32.totalorder %s25, 0
      %p172 = por %p170, %p171
      %p173 = scmp.ne.s32.totalorder %s161, %s162
      %p174 = scmp.eq.s32.totalorder %s26, 1
      %p175 = por %p173, %p174
      %p177 = scmp.ne.s32.totalorder %s162, %s176
      %p178 = scmp.eq.s32.totalorder %s26, 0
      %p179 = por %p177, %p178
      %s180 = ssub.s32 %s20, %s27
      %p181 = scmp.eq.s32.totalorder %s180, 0
      %s183 = sadd.s32 %s182, 1
      %s184 = scalar_select %p181, %s182, %s183
      %p187 = pneg %p181
      %p188 = scmp.eq.s32.totalorder %s20, 1
      %p189 = por %p187, %p188
      %p190 = scmp.ne.s32.totalorder %s182, %s185
      %p191 = scmp.eq.s32.totalorder %s20, 0
      %p192 = por %p190, %p191
      %p193 = scmp.ne.s32.totalorder %s182, %s185
      %p194 = scmp.eq.s32.totalorder %s25, 1
      %p195 = por %p193, %p194
      %p196 = scmp.ne.s32.totalorder %s185, %s186
      %p197 = scmp.eq.s32.totalorder %s25, 0
      %p198 = por %p196, %p197
      %p199 = scmp.ne.s32.totalorder %s185, %s186
      %p200 = scmp.eq.s32.totalorder %s26, 1
      %p201 = por %p199, %p200
      %p203 = scmp.ne.s32.totalorder %s186, %s202
      %p204 = scmp.eq.s32.totalorder %s26, 0
      %p205 = por %p203, %p204
      %p206 = scmp.le.s32.totalorder 1, %s20
      %p207 = scmp.lt.s32.totalorder %s20, 3
      %p208 = pnand %p206, %p207
      %p209 = pneg %p208
      // Predicated region
      $region9: #{tpu_custom_call.1} parent=5 // pred_check
        _
      $region10: #{tpu_custom_call.1} parent=5 // pred_check_branch
        %211 = sbr.rel (%p208) target = $region12
      $region11: #{tpu_custom_call.1} parent=5 // pred_region
        %s212 = ssub.s32 %s20, 1
        // Predicated region
        $region13: #{tpu_custom_call.1} parent=11 // pred_check
          %p213 = pneg %p67
        $region14: #{tpu_custom_call.1} parent=11 // pred_check_branch
          %215 = sbr.rel (%p213) target = $region16
        $region15: #{tpu_custom_call.1} parent=11 // pred_region
          %s217 = ssub.s32 1024, 1024
          %218 = vsyncadd [#allocation6], %s217
          %s219 = sshll.u32 [#allocation5], 4
          %s220 = int_to_ptr.vmem [resolvable:$true] %s219
          %225 = dma.hbm_to_vmem [thread:$0]  %s1, 1024, %s220, [#allocation6], 64, 64, 4
        $region16: #{tpu_custom_call.1} parent=11 // pred_fallthru
          _
        // Predicated region
        $region17: #{tpu_custom_call.1} parent=11 // pred_check
          %p226 = pneg %p88
        $region18: #{tpu_custom_call.1} parent=11 // pred_check_branch
          %228 = sbr.rel (%p226) target = $region20
        $region19: #{tpu_custom_call.1} parent=11 // pred_region
          _
        $region20: #{tpu_custom_call.1} parent=11 // pred_fallthru
          _
        // Predicated region
        $region21: #{tpu_custom_call.1} parent=11 // pred_check
          %p229 = pneg %p109
        $region22: #{tpu_custom_call.1} parent=11 // pred_check_branch
          %231 = sbr.rel (%p229) target = $region24
        $region23: #{tpu_custom_call.1} parent=11 // pred_region
          %s233 = ssub.s32 6144, 6144
          %234 = vsyncadd [#allocation6], %s233
          %s235 = sshll.u32 [#allocation7], 4
          %s236 = int_to_ptr.vmem [resolvable:$true] %s235
          %241 = dma.hbm_to_vmem [thread:$0]  %s3, 6144, %s236, [#allocation6], 64, 64, 4
        $region24: #{tpu_custom_call.1} parent=11 // pred_fallthru
          _
        // Predicated region
        $region25: #{tpu_custom_call.1} parent=11 // pred_check
          %p242 = pneg %p130
        $region26: #{tpu_custom_call.1} parent=11 // pred_check_branch
          %244 = sbr.rel (%p242) target = $region28
        $region27: #{tpu_custom_call.1} parent=11 // pred_region
          _
        $region28: #{tpu_custom_call.1} parent=11 // pred_fallthru
          _
        // Predicated region
        $region29: #{tpu_custom_call.1} parent=11 // pred_check
          %p245 = pneg %p151
        $region30: #{tpu_custom_call.1} parent=11 // pred_check_branch
          %247 = sbr.rel (%p245) target = $region32
        $region31: #{tpu_custom_call.1} parent=11 // pred_region
          _
        $region32: #{tpu_custom_call.1} parent=11 // pred_fallthru
          _
        // Predicated region
        $region33: #{tpu_custom_call.1} parent=11 // pred_check
          %p248 = pneg %p172
        $region34: #{tpu_custom_call.1} parent=11 // pred_check_branch
          %250 = sbr.rel (%p248) target = $region36
        $region35: #{tpu_custom_call.1} parent=11 // pred_region
          _
        $region36: #{tpu_custom_call.1} parent=11 // pred_fallthru
          _
      $region12: #{tpu_custom_call.1} parent=5 // pred_fallthru
        _
      %p251 = scmp.lt.s32.totalorder %s20, 2
      // Predicated region
      $region37: #{tpu_custom_call.1} parent=5 // pred_check
        %p252 = pneg %p251
      $region38: #{tpu_custom_call.1} parent=5 // pred_check_branch
        %254 = sbr.rel (%p252) target = $region40
      $region39: #{tpu_custom_call.1} parent=5 // pred_region
        // Predicated region
        $region41: #{tpu_custom_call.1} parent=39 // pred_check
          %p255 = pneg %p40
        $region42: #{tpu_custom_call.1} parent=39 // pred_check_branch
          %257 = sbr.rel (%p255) target = $region44
        $region43: #{tpu_custom_call.1} parent=39 // pred_region
          %s258 = sand.u32 %s30, 1
          %s259 = scalar_lea.sflag [#allocation3], %s258
          %s260 = sand.u32 %s30, 1
          %s261 = smul.addr %s260, 8
          %s262 = scalar_lea.vmem [#allocation2], %s261
          %s264 = ssub.s32 128, 128
          %265 = vsyncadd %s259, %s264
          %s266 = smul.addr %s20, 2
          %s267 = smul.addr %s266, 64
          %s268 = scalar_lea.hbm %s0, %s267
          %s269 = sshll.u32 %s262, 4
          %s270 = int_to_ptr.vmem [resolvable:$true] %s269
          %275 = dma.hbm_to_vmem [thread:$0]  %s268, 128, %s270, %s259, 64, 64, 4
        $region44: #{tpu_custom_call.1} parent=39 // pred_fallthru
          _
      $region40: #{tpu_custom_call.1} parent=5 // pred_fallthru
        _
      %p276 = scmp.le.s32.totalorder 1, %s20
      %p277 = scmp.lt.s32.totalorder %s20, 3
      %p278 = pnand %p276, %p277
      %p279 = pneg %p278
      // Predicated region
      $region45: #{tpu_custom_call.1} parent=5 // pred_check
        _
      $region46: #{tpu_custom_call.1} parent=5 // pred_check_branch
        %281 = sbr.rel (%p278) target = $region48
      $region47: #{tpu_custom_call.1} parent=5 // pred_region
        %s282 = ssub.s32 %s20, 1
        %s283 = sand.u32 %s33, 1
        %s284 = scalar_lea.sflag [#allocation3], %s283
        %s285 = sand.u32 %s33, 1
        %s286 = smul.addr %s285, 8
        %s287 = scalar_lea.vmem [#allocation2], %s286
        // Predicated region
        $region49: #{tpu_custom_call.1} parent=47 // pred_check
          %p288 = pneg %p46
        $region50: #{tpu_custom_call.1} parent=47 // pred_check_branch
          %290 = sbr.rel (%p288) target = $region52
        $region51: #{tpu_custom_call.1} parent=47 // pred_region
          %291 = dma.done %s284, 128
        $region52: #{tpu_custom_call.1} parent=47 // pred_fallthru
          _
        // Predicated region
        $region53: #{tpu_custom_call.1} parent=47 // pred_check
          %p292 = pneg %p67
        $region54: #{tpu_custom_call.1} parent=47 // pred_check_branch
          %294 = sbr.rel (%p292) target = $region56
        $region55: #{tpu_custom_call.1} parent=47 // pred_region
          %295 = dma.done [#allocation6], 1024
        $region56: #{tpu_custom_call.1} parent=47 // pred_fallthru
          _
        // Predicated region
        $region57: #{tpu_custom_call.1} parent=47 // pred_check
          %p296 = pneg %p109
        $region58: #{tpu_custom_call.1} parent=47 // pred_check_branch
          %298 = sbr.rel (%p296) target = $region60
        $region59: #{tpu_custom_call.1} parent=47 // pred_region
          %299 = dma.done [#allocation6], 6144
        $region60: #{tpu_custom_call.1} parent=47 // pred_fallthru
          _
        %s300 = sand.u32 %s33, 1
        %s301 = scalar_lea.sflag [#allocation3], %s300
        %s302 = sand.u32 %s33, 1
        %s303 = smul.addr %s302, 8
        %s304 = scalar_lea.vmem [#allocation2], %s303
        %p305 = pneg %p46
        %p306 = pneg %p43
        %p307 = pneg %p67
        %p308 = pneg %p64
        %p309 = pneg %p88
        %p310 = pneg %p85
        %p311 = pneg %p109
        %p312 = pneg %p106
        %p313 = pneg %p130
        %p314 = pneg %p127
        %p315 = pneg %p151
        %p316 = pneg %p148
        %p317 = pneg %p172
        %p318 = pneg %p169
        %p319 = pneg %p198
        %p320 = pneg %p195
        %s321 = sand.u32 %s185, 1
        %s322 = scalar_lea.sflag [#allocation4], %s321
        %s323 = sand.u32 %s185, 1
        %s324 = smul.addr %s323, 16
        %s325 = scalar_lea.vmem [#allocation8], %s324
        %v327 = vld [vmem:[%s287] sm:$0xf]
        %v328 = vld [vmem:[%s287 + $0x4] sm:$0xf]
        %v329 = vld [vmem:[#allocation5] sm:$0xf]
        %v330 = vld [vmem:[#allocation5 + $0x4] sm:$0xf]
        %v331 = vld [vmem:[#allocation5 + $0x8] sm:$0xf]
        %v332 = vld [vmem:[#allocation5 + $0xc] sm:$0xf]
        %v333 = vld [vmem:[#allocation5 + $0x10] sm:$0xf]
        %v334 = vld [vmem:[#allocation5 + $0x14] sm:$0xf]
        %v335 = vld [vmem:[#allocation5 + $0x18] sm:$0xf]
        %v336 = vld [vmem:[#allocation5 + $0x1c] sm:$0xf]
        %v337 = vld [vmem:[#allocation5 + $0x20] sm:$0xf]
        %v338 = vld [vmem:[#allocation5 + $0x24] sm:$0xf]
        %v339 = vld [vmem:[#allocation5 + $0x28] sm:$0xf]
        %v340 = vld [vmem:[#allocation5 + $0x2c] sm:$0xf]
        %v341 = vld [vmem:[#allocation5 + $0x30] sm:$0xf]
        %v342 = vld [vmem:[#allocation5 + $0x34] sm:$0xf]
        %v343 = vld [vmem:[#allocation5 + $0x38] sm:$0xf]
        %v344 = vld [vmem:[#allocation5 + $0x3c] sm:$0xf]
        %v345 = vld [vmem:[%s2] sm:$0x1]
        %v347 = vlaneseq
        %v348 = vshrl.u32 %v347, 7
        %v349 = vsub.s32 0, %v348
        %v350 = vrot.slane %v345, %v349
        %v354 = vunpack.c.l.b16 %v327
        %v355 = vunpack.c.l.b16 %v328
        %v356 = vpack.c.b16 %v355, %v354
        %v374 = vunpack.c.l.b16 %v329
        %v375 = vunpack.c.l.b16 %v330
        %v376 = vunpack.c.l.b16 %v331
        %v377 = vunpack.c.l.b16 %v332
        %v378 = vunpack.c.l.b16 %v333
        %v379 = vunpack.c.l.b16 %v334
        %v380 = vunpack.c.l.b16 %v335
        %v381 = vunpack.c.l.b16 %v336
        %v382 = vunpack.c.l.b16 %v337
        %v383 = vunpack.c.l.b16 %v338
        %v384 = vunpack.c.l.b16 %v339
        %v385 = vunpack.c.l.b16 %v340
        %v386 = vunpack.c.l.b16 %v341
        %v387 = vunpack.c.l.b16 %v342
        %v388 = vunpack.c.l.b16 %v343
        %v389 = vunpack.c.l.b16 %v344
        %v390 = vpack.c.b16 %v375, %v374
        %v391 = vpack.c.b16 %v377, %v376
        %v392 = vpack.c.b16 %v379, %v378
        %v393 = vpack.c.b16 %v381, %v380
        %v394 = vpack.c.b16 %v383, %v382
        %v395 = vpack.c.b16 %v385, %v384
        %v396 = vpack.c.b16 %v387, %v386
        %v397 = vpack.c.b16 %v389, %v388
        %406 = vmatprep.subr.bf16.mxu0 0
        %407 = vmatpush1.bf16.msra.mxu0 %v390
        %408 = vmatprep.subr.bf16.mxu0 0
        %409 = vmatpush1.bf16.msra.mxu0 %v391
        %410 = vmatprep.subr.bf16.mxu0 0
        %411 = vmatpush1.bf16.msra.mxu0 %v392
        %412 = vmatprep.subr.bf16.mxu0 0
        %413 = vmatpush1.bf16.msra.mxu0 %v393
        %414 = vmatprep.subr.bf16.mxu0 0
        %415 = vmatpush1.bf16.msra.mxu0 %v394
        %416 = vmatprep.subr.bf16.mxu0 0
        %417 = vmatpush1.bf16.msra.mxu0 %v395
        %418 = vmatprep.subr.bf16.mxu0 0
        %419 = vmatpush1.bf16.msra.mxu0 %v396
        %420 = vmatprep.subr.bf16.mxu0 0
        %421 = vmatpush1.bf16.msra.mxu0 %v397
        %422 = vmatprep.subr.bf16.mxu0 0
        %423 = vmatpush1.bf16.msra.mxu0 0
        %424 = vmatprep.subr.bf16.mxu0 0
        %425 = vmatpush1.bf16.msra.mxu0 0
        %426 = vmatprep.subr.bf16.mxu0 0
        %427 = vmatpush1.bf16.msra.mxu0 0
        %428 = vmatprep.subr.bf16.mxu0 0
        %429 = vmatpush1.bf16.msra.mxu0 0
        %430 = vmatprep.subr.bf16.mxu0 0
        %431 = vmatpush1.bf16.msra.mxu0 0
        %432 = vmatprep.subr.bf16.mxu0 0
        %433 = vmatpush1.bf16.msra.mxu0 0
        %434 = vmatprep.subr.bf16.mxu0 0
        %435 = vmatpush1.bf16.msra.mxu0 0
        %436 = vmatprep.subr.bf16.mxu0 0
        %437 = vmatpush1.bf16.msra.mxu0 0
        %438 = vmatprep.mubr.bf16.mxu0 0
        %439 = vmatmul.mubr.bf16.gmra.mrb[0].mxu0 %v356
        %v440 = vpop.f32.mrb[0].mxu0
        %v441 = vadd.f32 %v350, %v440
        %v442 = vpop.f32.mrb[0].mxu0
        %v443 = vpop.f32.mrb[0].mxu0
        %v444 = vadd.f32 %v350, %v443
        %v445 = vpop.f32.mrb[0].mxu0
        %446 = vdwg.mxu0
        %v447 = vtanh.pop %v441
        %v448 = vtanh.pop %v444
        %v449 = vlaneseq
        %v450 = vshrl.u32 %v449, 7
        %v451 = vadd.s32 %v450, 8
        %vm452 = vcmp.eq.s32.totalorder %v450, 0
        %vm453 = vcmp.eq.s32.totalorder %v451, 0
        %v454 = vrot.slane %v447, 7
        %v455 = vrot.slane %v448, 7
        %vm456 = vcmp.lt.s32.totalorder %v450, 1
        %v457 = vsel %vm456, %v454, %v455
        %v458 = vsel %vm456, %v455, %v454
        %v459 = vsel %vm452, 0.0, %v458
        %v460 = vsel %vm453, 0.0, %v457
        %vm461 = vcmp.eq.s32.totalorder %v450, 15
        %vm462 = vcmp.eq.s32.totalorder %v451, 15
        %v463 = vrot.slane %v447, 1
        %v464 = vrot.slane %v448, 1
        %vm465 = vcmp.lt.s32.totalorder %v450, 7
        %v466 = vsel %vm465, %v463, %v464
        %v467 = vsel %vm465, %v464, %v463
        %v468 = vsel %vm461, 0.0, %v466
        %v469 = vsel %vm462, 0.0, %v467
        %v470 = vpack.c.bf16 %v460, %v459
        %v471 = vpack.c.bf16 %v448, %v447
        %v472 = vpack.c.bf16 %v469, %v468
        %v473 = vld [vmem:[#allocation7] sm:$0xf]
        %v474 = vld [vmem:[#allocation7 + $0x4] sm:$0xf]
        %v475 = vld [vmem:[#allocation7 + $0x8] sm:$0xf]
        %v476 = vld [vmem:[#allocation7 + $0xc] sm:$0xf]
        %v477 = vld [vmem:[#allocation7 + $0x10] sm:$0xf]
        %v478 = vld [vmem:[#allocation7 + $0x14] sm:$0xf]
        %v479 = vld [vmem:[#allocation7 + $0x18] sm:$0xf]
        %v480 = vld [vmem:[#allocation7 + $0x1c] sm:$0xf]
        %v481 = vld [vmem:[#allocation7 + $0x20] sm:$0xf]
        %v482 = vld [vmem:[#allocation7 + $0x24] sm:$0xf]
        %v483 = vld [vmem:[#allocation7 + $0x28] sm:$0xf]
        %v484 = vld [vmem:[#allocation7 + $0x2c] sm:$0xf]
        %v485 = vld [vmem:[#allocation7 + $0x30] sm:$0xf]
        %v486 = vld [vmem:[#allocation7 + $0x34] sm:$0xf]
        %v487 = vld [vmem:[#allocation7 + $0x38] sm:$0xf]
        %v488 = vld [vmem:[#allocation7 + $0x3c] sm:$0xf]
        %v489 = vld [vmem:[#allocation7 + $0x40] sm:$0xf]
        %v490 = vld [vmem:[#allocation7 + $0x44] sm:$0xf]
        %v491 = vld [vmem:[#allocation7 + $0x48] sm:$0xf]
        %v492 = vld [vmem:[#allocation7 + $0x4c] sm:$0xf]
        %v493 = vld [vmem:[#allocation7 + $0x50] sm:$0xf]
        %v494 = vld [vmem:[#allocation7 + $0x54] sm:$0xf]
        %v495 = vld [vmem:[#allocation7 + $0x58] sm:$0xf]
        %v496 = vld [vmem:[#allocation7 + $0x5c] sm:$0xf]
        %v497 = vld [vmem:[#allocation7 + $0x60] sm:$0xf]
        %v498 = vld [vmem:[#allocation7 + $0x64] sm:$0xf]
        %v499 = vld [vmem:[#allocation7 + $0x68] sm:$0xf]
        %v500 = vld [vmem:[#allocation7 + $0x6c] sm:$0xf]
        %v501 = vld [vmem:[#allocation7 + $0x70] sm:$0xf]
        %v502 = vld [vmem:[#allocation7 + $0x74] sm:$0xf]
        %v503 = vld [vmem:[#allocation7 + $0x78] sm:$0xf]
        %v504 = vld [vmem:[#allocation7 + $0x7c] sm:$0xf]
        %v505 = vld [vmem:[#allocation7 + $0x80] sm:$0xf]
        %v506 = vld [vmem:[#allocation7 + $0x84] sm:$0xf]
        %v507 = vld [vmem:[#allocation7 + $0x88] sm:$0xf]
        %v508 = vld [vmem:[#allocation7 + $0x8c] sm:$0xf]
        %v509 = vld [vmem:[#allocation7 + $0x90] sm:$0xf]
        %v510 = vld [vmem:[#allocation7 + $0x94] sm:$0xf]
        %v511 = vld [vmem:[#allocation7 + $0x98] sm:$0xf]
        %v512 = vld [vmem:[#allocation7 + $0x9c] sm:$0xf]
        %v513 = vld [vmem:[#allocation7 + $0xa0] sm:$0xf]
        %v514 = vld [vmem:[#allocation7 + $0xa4] sm:$0xf]
        %v515 = vld [vmem:[#allocation7 + $0xa8] sm:$0xf]
        %v516 = vld [vmem:[#allocation7 + $0xac] sm:$0xf]
        %v517 = vld [vmem:[#allocation7 + $0xb0] sm:$0xf]
        %v518 = vld [vmem:[#allocation7 + $0xb4] sm:$0xf]
        %v519 = vld [vmem:[#allocation7 + $0xb8] sm:$0xf]
        %v520 = vld [vmem:[#allocation7 + $0xbc] sm:$0xf]
        %v521 = vld [vmem:[%s4] sm:$0x1]
        %v523 = vlaneseq
        %v524 = vshrl.u32 %v523, 7
        %v525 = vsub.s32 0, %v524
        %v526 = vrot.slane %v521, %v525
        %v576 = vunpack.c.l.b16 %v473
        %v577 = vunpack.c.l.b16 %v474
        %v578 = vunpack.c.l.b16 %v475
        %v579 = vunpack.c.l.b16 %v476
        %v580 = vunpack.c.l.b16 %v477
        %v581 = vunpack.c.l.b16 %v478
        %v582 = vunpack.c.l.b16 %v479
        %v583 = vunpack.c.l.b16 %v480
        %v584 = vunpack.c.l.b16 %v481
        %v585 = vunpack.c.l.b16 %v482
        %v586 = vunpack.c.l.b16 %v483
        %v587 = vunpack.c.l.b16 %v484
        %v588 = vunpack.c.l.b16 %v485
        %v589 = vunpack.c.l.b16 %v486
        %v590 = vunpack.c.l.b16 %v487
        %v591 = vunpack.c.l.b16 %v488
        %v592 = vunpack.c.l.b16 %v489
        %v593 = vunpack.c.l.b16 %v490
        %v594 = vunpack.c.l.b16 %v491
        %v595 = vunpack.c.l.b16 %v492
        %v596 = vunpack.c.l.b16 %v493
        %v597 = vunpack.c.l.b16 %v494
        %v598 = vunpack.c.l.b16 %v495
        %v599 = vunpack.c.l.b16 %v496
        %v600 = vunpack.c.l.b16 %v497
        %v601 = vunpack.c.l.b16 %v498
        %v602 = vunpack.c.l.b16 %v499
        %v603 = vunpack.c.l.b16 %v500
        %v604 = vunpack.c.l.b16 %v501
        %v605 = vunpack.c.l.b16 %v502
        %v606 = vunpack.c.l.b16 %v503
        %v607 = vunpack.c.l.b16 %v504
        %v608 = vunpack.c.l.b16 %v505
        %v609 = vunpack.c.l.b16 %v506
        %v610 = vunpack.c.l.b16 %v507
        %v611 = vunpack.c.l.b16 %v508
        %v612 = vunpack.c.l.b16 %v509
        %v613 = vunpack.c.l.b16 %v510
        %v614 = vunpack.c.l.b16 %v511
        %v615 = vunpack.c.l.b16 %v512
        %v616 = vunpack.c.l.b16 %v513
        %v617 = vunpack.c.l.b16 %v514
        %v618 = vunpack.c.l.b16 %v515
        %v619 = vunpack.c.l.b16 %v516
        %v620 = vunpack.c.l.b16 %v517
        %v621 = vunpack.c.l.b16 %v518
        %v622 = vunpack.c.l.b16 %v519
        %v623 = vunpack.c.l.b16 %v520
        %v624 = vpack.c.b16 %v577, %v576
        %v625 = vpack.c.b16 %v579, %v578
        %v626 = vpack.c.b16 %v581, %v580
        %v627 = vpack.c.b16 %v583, %v582
        %v628 = vpack.c.b16 %v585, %v584
        %v629 = vpack.c.b16 %v587, %v586
        %v630 = vpack.c.b16 %v589, %v588
        %v631 = vpack.c.b16 %v591, %v590
        %v632 = vpack.c.b16 %v593, %v592
        %v633 = vpack.c.b16 %v595, %v594
        %v634 = vpack.c.b16 %v597, %v596
        %v635 = vpack.c.b16 %v599, %v598
        %v636 = vpack.c.b16 %v601, %v600
        %v637 = vpack.c.b16 %v603, %v602
        %v638 = vpack.c.b16 %v605, %v604
        %v639 = vpack.c.b16 %v607, %v606
        %v640 = vpack.c.b16 %v609, %v608
        %v641 = vpack.c.b16 %v611, %v610
        %v642 = vpack.c.b16 %v613, %v612
        %v643 = vpack.c.b16 %v615, %v614
        %v644 = vpack.c.b16 %v617, %v616
        %v645 = vpack.c.b16 %v619, %v618
        %v646 = vpack.c.b16 %v621, %v620
        %v647 = vpack.c.b16 %v623, %v622
        %672 = vmatprep.subr.bf16.mxu0 0
        %673 = vmatpush1.bf16.msra.mxu0 %v624
        %674 = vmatprep.subr.bf16.mxu0 0
        %675 = vmatpush1.bf16.msra.mxu0 %v625
        %676 = vmatprep.subr.bf16.mxu0 0
        %677 = vmatpush1.bf16.msra.mxu0 %v626
        %678 = vmatprep.subr.bf16.mxu0 0
        %679 = vmatpush1.bf16.msra.mxu0 %v627
        %680 = vmatprep.subr.bf16.mxu0 0
        %681 = vmatpush1.bf16.msra.mxu0 %v628
        %682 = vmatprep.subr.bf16.mxu0 0
        %683 = vmatpush1.bf16.msra.mxu0 %v629
        %684 = vmatprep.subr.bf16.mxu0 0
        %685 = vmatpush1.bf16.msra.mxu0 %v630
        %686 = vmatprep.subr.bf16.mxu0 0
        %687 = vmatpush1.bf16.msra.mxu0 %v631
        %688 = vmatprep.subr.bf16.mxu0 0
        %689 = vmatpush1.bf16.msra.mxu0 %v632
        %690 = vmatprep.subr.bf16.mxu0 0
        %691 = vmatpush1.bf16.msra.mxu0 %v633
        %692 = vmatprep.subr.bf16.mxu0 0
        %693 = vmatpush1.bf16.msra.mxu0 %v634
        %694 = vmatprep.subr.bf16.mxu0 0
        %695 = vmatpush1.bf16.msra.mxu0 %v635
        %696 = vmatprep.subr.bf16.mxu0 0
        %697 = vmatpush1.bf16.msra.mxu0 %v636
        %698 = vmatprep.subr.bf16.mxu0 0
        %699 = vmatpush1.bf16.msra.mxu0 %v637
        %700 = vmatprep.subr.bf16.mxu0 0
        %701 = vmatpush1.bf16.msra.mxu0 %v638
        %702 = vmatprep.subr.bf16.mxu0 0
        %703 = vmatpush1.bf16.msra.mxu0 %v639
        %704 = vmatprep.mubr.bf16.mxu0 %v471
        %705 = vmatmul.mubr.bf16.gmra.mrb[0].mxu0 %v470
        %v706 = vpop.f32.mrb[0].mxu0
        %v707 = vadd.f32 %v526, %v706
        %v708 = vpop.f32.mrb[0].mxu0
        %v709 = vpop.f32.mrb[0].mxu0
        %v710 = vadd.f32 %v526, %v709
        %v711 = vpop.f32.mrb[0].mxu0
        %712 = vdwg.mxu0
        %713 = vmatprep.subr.bf16.mxu0 0
        %714 = vmatpush1.bf16.msra.mxu0 %v640
        %715 = vmatprep.subr.bf16.mxu0 0
        %716 = vmatpush1.bf16.msra.mxu0 %v641
        %717 = vmatprep.subr.bf16.mxu0 0
        %718 = vmatpush1.bf16.msra.mxu0 %v642
        %719 = vmatprep.subr.bf16.mxu0 0
        %720 = vmatpush1.bf16.msra.mxu0 %v643
        %721 = vmatprep.subr.bf16.mxu0 0
        %722 = vmatpush1.bf16.msra.mxu0 %v644
        %723 = vmatprep.subr.bf16.mxu0 0
        %724 = vmatpush1.bf16.msra.mxu0 %v645
        %725 = vmatprep.subr.bf16.mxu0 0
        %726 = vmatpush1.bf16.msra.mxu0 %v646
        %727 = vmatprep.subr.bf16.mxu0 0
        %728 = vmatpush1.bf16.msra.mxu0 %v647
        %729 = vmatprep.subr.bf16.mxu0 0
        %730 = vmatpush1.bf16.msra.mxu0 0
        %731 = vmatprep.subr.bf16.mxu0 0
        %732 = vmatpush1.bf16.msra.mxu0 0
        %733 = vmatprep.subr.bf16.mxu0 0
        %734 = vmatpush1.bf16.msra.mxu0 0
        %735 = vmatprep.subr.bf16.mxu0 0
        %736 = vmatpush1.bf16.msra.mxu0 0
        %737 = vmatprep.subr.bf16.mxu0 0
        %738 = vmatpush1.bf16.msra.mxu0 0
        %739 = vmatprep.subr.bf16.mxu0 0
        %740 = vmatpush1.bf16.msra.mxu0 0
        %741 = vmatprep.subr.bf16.mxu0 0
        %742 = vmatpush1.bf16.msra.mxu0 0
        %743 = vmatprep.subr.bf16.mxu0 0
        %744 = vmatpush1.bf16.msra.mxu0 0
        %745 = vmatprep.mubr.bf16.mxu0 0
        %746 = vmatmul.mubr.bf16.gmra.mrb[0].mxu0 %v472
        %v747 = vpop.f32.mrb[0].mxu0
        %v748 = vadd.f32 %v707, %v747
        %v749 = vpop.f32.mrb[0].mxu0
        %v750 = vpop.f32.mrb[0].mxu0
        %v751 = vadd.f32 %v710, %v750
        %v752 = vpop.f32.mrb[0].mxu0
        %753 = vdwg.mxu0
        %v754 = vmax.f32 %v748, 0.0
        %v755 = vmax.f32 %v751, 0.0
        %v756 = vld [vmem:[%s5] sm:$0x1]
        %v758 = vlaneseq
        %v759 = vshrl.u32 %v758, 7
        %v760 = vsub.s32 0, %v759
        %v761 = vrot.slane %v756, %v760
        %v763 = vmul.f32 %v754, %v761
        %v764 = vmul.f32 %v755, %v761
        %v765 = vld [vmem:[%s6] sm:$0x1]
        %v767 = vlaneseq
        %v768 = vshrl.u32 %v767, 7
        %v769 = vsub.s32 0, %v768
        %v770 = vrot.slane %v765, %v769
        %v772 = vadd.f32 %v763, %v770
        %v773 = vadd.f32 %v764, %v770
        %v774 = vrot.slane %v772, 7
        %v775 = vrot.slane %v773, 7
        %v776 = vsel %vm456, %v774, %v775
        %v777 = vsel %vm456, %v775, %v774
        %v778 = vsel %vm452, 0.0, %v777
        %v779 = vsel %vm453, 0.0, %v776
        %v780 = vrot.slane %v772, 1
        %v781 = vrot.slane %v773, 1
        %v782 = vsel %vm465, %v780, %v781
        %v783 = vsel %vm465, %v781, %v780
        %v784 = vsel %vm461, 0.0, %v782
        %v785 = vsel %vm462, 0.0, %v783
        %v786 = vpack.c.bf16 %v779, %v778
        %v787 = vpack.c.bf16 %v773, %v772
        %v788 = vpack.c.bf16 %v785, %v784
        %s789 = scalar_lea.vmem [#allocation7], 192
        %v790 = vld [vmem:[%s789] sm:$0xf]
        %v791 = vld [vmem:[%s789 + $0x4] sm:$0xf]
        %v792 = vld [vmem:[%s789 + $0x8] sm:$0xf]
        %v793 = vld [vmem:[%s789 + $0xc] sm:$0xf]
        %v794 = vld [vmem:[%s789 + $0x10] sm:$0xf]
        %v795 = vld [vmem:[%s789 + $0x14] sm:$0xf]
        %v796 = vld [vmem:[%s789 + $0x18] sm:$0xf]
        %v797 = vld [vmem:[%s789 + $0x1c] sm:$0xf]
        %v798 = vld [vmem:[%s789 + $0x20] sm:$0xf]
        %v799 = vld [vmem:[%s789 + $0x24] sm:$0xf]
        %v800 = vld [vmem:[%s789 + $0x28] sm:$0xf]
        %v801 = vld [vmem:[%s789 + $0x2c] sm:$0xf]
        %v802 = vld [vmem:[%s789 + $0x30] sm:$0xf]
        %v803 = vld [vmem:[%s789 + $0x34] sm:$0xf]
        %v804 = vld [vmem:[%s789 + $0x38] sm:$0xf]
        %v805 = vld [vmem:[%s789 + $0x3c] sm:$0xf]
        %v806 = vld [vmem:[%s789 + $0x40] sm:$0xf]
        %v807 = vld [vmem:[%s789 + $0x44] sm:$0xf]
        %v808 = vld [vmem:[%s789 + $0x48] sm:$0xf]
        %v809 = vld [vmem:[%s789 + $0x4c] sm:$0xf]
        %v810 = vld [vmem:[%s789 + $0x50] sm:$0xf]
        %v811 = vld [vmem:[%s789 + $0x54] sm:$0xf]
        %v812 = vld [vmem:[%s789 + $0x58] sm:$0xf]
        %v813 = vld [vmem:[%s789 + $0x5c] sm:$0xf]
        %v814 = vld [vmem:[%s789 + $0x60] sm:$0xf]
        %v815 = vld [vmem:[%s789 + $0x64] sm:$0xf]
        %v816 = vld [vmem:[%s789 + $0x68] sm:$0xf]
        %v817 = vld [vmem:[%s789 + $0x6c] sm:$0xf]
        %v818 = vld [vmem:[%s789 + $0x70] sm:$0xf]
        %v819 = vld [vmem:[%s789 + $0x74] sm:$0xf]
        %v820 = vld [vmem:[%s789 + $0x78] sm:$0xf]
        %v821 = vld [vmem:[%s789 + $0x7c] sm:$0xf]
        %v822 = vld [vmem:[%s789 + $0x80] sm:$0xf]
        %v823 = vld [vmem:[%s789 + $0x84] sm:$0xf]
        %v824 = vld [vmem:[%s789 + $0x88] sm:$0xf]
        %v825 = vld [vmem:[%s789 + $0x8c] sm:$0xf]
        %v826 = vld [vmem:[%s789 + $0x90] sm:$0xf]
        %v827 = vld [vmem:[%s789 + $0x94] sm:$0xf]
        %v828 = vld [vmem:[%s789 + $0x98] sm:$0xf]
        %v829 = vld [vmem:[%s789 + $0x9c] sm:$0xf]
        %v830 = vld [vmem:[%s789 + $0xa0] sm:$0xf]
        %v831 = vld [vmem:[%s789 + $0xa4] sm:$0xf]
        %v832 = vld [vmem:[%s789 + $0xa8] sm:$0xf]
        %v833 = vld [vmem:[%s789 + $0xac] sm:$0xf]
        %v834 = vld [vmem:[%s789 + $0xb0] sm:$0xf]
        %v835 = vld [vmem:[%s789 + $0xb4] sm:$0xf]
        %v836 = vld [vmem:[%s789 + $0xb8] sm:$0xf]
        %v837 = vld [vmem:[%s789 + $0xbc] sm:$0xf]
        %s838 = scalar_lea.vmem %s4, 1
        %v839 = vld [vmem:[%s838] sm:$0x1]
        %v841 = vlaneseq
        %v842 = vshrl.u32 %v841, 7
        %v843 = vsub.s32 0, %v842
        %v844 = vrot.slane %v839, %v843
        %v894 = vunpack.c.l.b16 %v790
        %v895 = vunpack.c.l.b16 %v791
        %v896 = vunpack.c.l.b16 %v792
        %v897 = vunpack.c.l.b16 %v793
        %v898 = vunpack.c.l.b16 %v794
        %v899 = vunpack.c.l.b16 %v795
        %v900 = vunpack.c.l.b16 %v796
        %v901 = vunpack.c.l.b16 %v797
        %v902 = vunpack.c.l.b16 %v798
        %v903 = vunpack.c.l.b16 %v799
        %v904 = vunpack.c.l.b16 %v800
        %v905 = vunpack.c.l.b16 %v801
        %v906 = vunpack.c.l.b16 %v802
        %v907 = vunpack.c.l.b16 %v803
        %v908 = vunpack.c.l.b16 %v804
        %v909 = vunpack.c.l.b16 %v805
        %v910 = vunpack.c.l.b16 %v806
        %v911 = vunpack.c.l.b16 %v807
        %v912 = vunpack.c.l.b16 %v808
        %v913 = vunpack.c.l.b16 %v809
        %v914 = vunpack.c.l.b16 %v810
        %v915 = vunpack.c.l.b16 %v811
        %v916 = vunpack.c.l.b16 %v812
        %v917 = vunpack.c.l.b16 %v813
        %v918 = vunpack.c.l.b16 %v814
        %v919 = vunpack.c.l.b16 %v815
        %v920 = vunpack.c.l.b16 %v816
        %v921 = vunpack.c.l.b16 %v817
        %v922 = vunpack.c.l.b16 %v818
        %v923 = vunpack.c.l.b16 %v819
        %v924 = vunpack.c.l.b16 %v820
        %v925 = vunpack.c.l.b16 %v821
        %v926 = vunpack.c.l.b16 %v822
        %v927 = vunpack.c.l.b16 %v823
        %v928 = vunpack.c.l.b16 %v824
        %v929 = vunpack.c.l.b16 %v825
        %v930 = vunpack.c.l.b16 %v826
        %v931 = vunpack.c.l.b16 %v827
        %v932 = vunpack.c.l.b16 %v828
        %v933 = vunpack.c.l.b16 %v829
        %v934 = vunpack.c.l.b16 %v830
        %v935 = vunpack.c.l.b16 %v831
        %v936 = vunpack.c.l.b16 %v832
        %v937 = vunpack.c.l.b16 %v833
        %v938 = vunpack.c.l.b16 %v834
        %v939 = vunpack.c.l.b16 %v835
        %v940 = vunpack.c.l.b16 %v836
        %v941 = vunpack.c.l.b16 %v837
        %v942 = vpack.c.b16 %v895, %v894
        %v943 = vpack.c.b16 %v897, %v896
        %v944 = vpack.c.b16 %v899, %v898
        %v945 = vpack.c.b16 %v901, %v900
        %v946 = vpack.c.b16 %v903, %v902
        %v947 = vpack.c.b16 %v905, %v904
        %v948 = vpack.c.b16 %v907, %v906
        %v949 = vpack.c.b16 %v909, %v908
        %v950 = vpack.c.b16 %v911, %v910
        %v951 = vpack.c.b16 %v913, %v912
        %v952 = vpack.c.b16 %v915, %v914
        %v953 = vpack.c.b16 %v917, %v916
        %v954 = vpack.c.b16 %v919, %v918
        %v955 = vpack.c.b16 %v921, %v920
        %v956 = vpack.c.b16 %v923, %v922
        %v957 = vpack.c.b16 %v925, %v924
        %v958 = vpack.c.b16 %v927, %v926
        %v959 = vpack.c.b16 %v929, %v928
        %v960 = vpack.c.b16 %v931, %v930
        %v961 = vpack.c.b16 %v933, %v932
        %v962 = vpack.c.b16 %v935, %v934
        %v963 = vpack.c.b16 %v937, %v936
        %v964 = vpack.c.b16 %v939, %v938
        %v965 = vpack.c.b16 %v941, %v940
        %990 = vmatprep.subr.bf16.mxu0 0
        %991 = vmatpush1.bf16.msra.mxu0 %v942
        %992 = vmatprep.subr.bf16.mxu0 0
        %993 = vmatpush1.bf16.msra.mxu0 %v943
        %994 = vmatprep.subr.bf16.mxu0 0
        %995 = vmatpush1.bf16.msra.mxu0 %v944
        %996 = vmatprep.subr.bf16.mxu0 0
        %997 = vmatpush1.bf16.msra.mxu0 %v945
        %998 = vmatprep.subr.bf16.mxu0 0
        %999 = vmatpush1.bf16.msra.mxu0 %v946
        %1000 = vmatprep.subr.bf16.mxu0 0
        %1001 = vmatpush1.bf16.msra.mxu0 %v947
        %1002 = vmatprep.subr.bf16.mxu0 0
        %1003 = vmatpush1.bf16.msra.mxu0 %v948
        %1004 = vmatprep.subr.bf16.mxu0 0
        %1005 = vmatpush1.bf16.msra.mxu0 %v949
        %1006 = vmatprep.subr.bf16.mxu0 0
        %1007 = vmatpush1.bf16.msra.mxu0 %v950
        %1008 = vmatprep.subr.bf16.mxu0 0
        %1009 = vmatpush1.bf16.msra.mxu0 %v951
        %1010 = vmatprep.subr.bf16.mxu0 0
        %1011 = vmatpush1.bf16.msra.mxu0 %v952
        %1012 = vmatprep.subr.bf16.mxu0 0
        %1013 = vmatpush1.bf16.msra.mxu0 %v953
        %1014 = vmatprep.subr.bf16.mxu0 0
        %1015 = vmatpush1.bf16.msra.mxu0 %v954
        %1016 = vmatprep.subr.bf16.mxu0 0
        %1017 = vmatpush1.bf16.msra.mxu0 %v955
        %1018 = vmatprep.subr.bf16.mxu0 0
        %1019 = vmatpush1.bf16.msra.mxu0 %v956
        %1020 = vmatprep.subr.bf16.mxu0 0
        %1021 = vmatpush1.bf16.msra.mxu0 %v957
        %1022 = vmatprep.mubr.bf16.mxu0 %v787
        %1023 = vmatmul.mubr.bf16.gmra.mrb[0].mxu0 %v786
        %v1024 = vpop.f32.mrb[0].mxu0
        %v1025 = vadd.f32 %v844, %v1024
        %v1026 = vpop.f32.mrb[0].mxu0
        %v1027 = vpop.f32.mrb[0].mxu0
        %v1028 = vadd.f32 %v844, %v1027
        %v1029 = vpop.f32.mrb[0].mxu0
        %1030 = vdwg.mxu0
        %1031 = vmatprep.subr.bf16.mxu0 0
        %1032 = vmatpush1.bf16.msra.mxu0 %v958
        %1033 = vmatprep.subr.bf16.mxu0 0
        %1034 = vmatpush1.bf16.msra.mxu0 %v959
        %1035 = vmatprep.subr.bf16.mxu0 0
        %1036 = vmatpush1.bf16.msra.mxu0 %v960
        %1037 = vmatprep.subr.bf16.mxu0 0
        %1038 = vmatpush1.bf16.msra.mxu0 %v961
        %1039 = vmatprep.subr.bf16.mxu0 0
        %1040 = vmatpush1.bf16.msra.mxu0 %v962
        %1041 = vmatprep.subr.bf16.mxu0 0
        %1042 = vmatpush1.bf16.msra.mxu0 %v963
        %1043 = vmatprep.subr.bf16.mxu0 0
        %1044 = vmatpush1.bf16.msra.mxu0 %v964
        %1045 = vmatprep.subr.bf16.mxu0 0
        %1046 = vmatpush1.bf16.msra.mxu0 %v965
        %1047 = vmatprep.subr.bf16.mxu0 0
        %1048 = vmatpush1.bf16.msra.mxu0 0
        %1049 = vmatprep.subr.bf16.mxu0 0
        %1050 = vmatpush1.bf16.msra.mxu0 0
        %1051 = vmatprep.subr.bf16.mxu0 0
        %1052 = vmatpush1.bf16.msra.mxu0 0
        %1053 = vmatprep.subr.bf16.mxu0 0
        %1054 = vmatpush1.bf16.msra.mxu0 0
        %1055 = vmatprep.subr.bf16.mxu0 0
        %1056 = vmatpush1.bf16.msra.mxu0 0
        %1057 = vmatprep.subr.bf16.mxu0 0
        %1058 = vmatpush1.bf16.msra.mxu0 0
        %1059 = vmatprep.subr.bf16.mxu0 0
        %1060 = vmatpush1.bf16.msra.mxu0 0
        %1061 = vmatprep.subr.bf16.mxu0 0
        %1062 = vmatpush1.bf16.msra.mxu0 0
        %1063 = vmatprep.mubr.bf16.mxu0 0
        %1064 = vmatmul.mubr.bf16.gmra.mrb[0].mxu0 %v788
        %v1065 = vpop.f32.mrb[0].mxu0
        %v1066 = vadd.f32 %v1025, %v1065
        %v1067 = vpop.f32.mrb[0].mxu0
        %v1068 = vpop.f32.mrb[0].mxu0
        %v1069 = vadd.f32 %v1028, %v1068
        %v1070 = vpop.f32.mrb[0].mxu0
        %1071 = vdwg.mxu0
        %v1072 = vmax.f32 %v1066, 0.0
        %v1073 = vmax.f32 %v1069, 0.0
        %s1074 = scalar_lea.vmem %s5, 1
        %v1075 = vld [vmem:[%s1074] sm:$0x1]
        %v1077 = vlaneseq
        %v1078 = vshrl.u32 %v1077, 7
        %v1079 = vsub.s32 0, %v1078
        %v1080 = vrot.slane %v1075, %v1079
        %v1082 = vmul.f32 %v1072, %v1080
        %v1083 = vmul.f32 %v1073, %v1080
        %s1084 = scalar_lea.vmem %s6, 1
        %v1085 = vld [vmem:[%s1084] sm:$0x1]
        %v1087 = vlaneseq
        %v1088 = vshrl.u32 %v1087, 7
        %v1089 = vsub.s32 0, %v1088
        %v1090 = vrot.slane %v1085, %v1089
        %v1092 = vadd.f32 %v1082, %v1090
        %v1093 = vadd.f32 %v1083, %v1090
        %1094 = vst [vmem:[%s325] sm:$0xff] %v1092
        %1095 = vst [vmem:[%s325 + $0x8] sm:$0xff] %v1093
        %s1096 = sand.u32 %s185, 1
        %s1097 = scalar_lea.sflag [#allocation4], %s1096
        %s1098 = sand.u32 %s185, 1
        %s1099 = smul.addr %s1098, 16
        %s1100 = scalar_lea.vmem [#allocation8], %s1099
        // Predicated region
        $region61: #{tpu_custom_call.1} parent=47 // pred_check
          %p1101 = pneg %p195
        $region62: #{tpu_custom_call.1} parent=47 // pred_check_branch
          %1103 = sbr.rel (%p1101) target = $region64
        $region63: #{tpu_custom_call.1} parent=47 // pred_region
          %s1105 = ssub.s32 256, 256
          %1106 = vsyncadd %s1097, %s1105
          %s1107 = smul.addr %s25, 2
          %s1108 = smul.addr %s1107, 128
          %s1109 = scalar_lea.hbm %s7, %s1108
          %s1110 = sshll.u32 %s1100, 4
          %s1111 = int_to_ptr.vmem [resolvable:$true] %s1110
          %1116 = dma.vmem_to_hbm [thread:$0]  %s1111, 256, %s1109, %s1097, 128, 128, 8
        $region64: #{tpu_custom_call.1} parent=47 // pred_fallthru
          _
      $region48: #{tpu_custom_call.1} parent=5 // pred_fallthru
        _
      %p1117 = scmp.le.s32.totalorder 2, %s20
      // Predicated region
      $region65: #{tpu_custom_call.1} parent=5 // pred_check
        %p1118 = pneg %p1117
      $region66: #{tpu_custom_call.1} parent=5 // pred_check_branch
        %1120 = sbr.rel (%p1118) target = $region68
      $region67: #{tpu_custom_call.1} parent=5 // pred_region
        %s1121 = ssub.s32 %s20, 2
        // Predicated region
        $region69: #{tpu_custom_call.1} parent=67 // pred_check
          %p1122 = pneg %p201
        $region70: #{tpu_custom_call.1} parent=67 // pred_check_branch
          %1124 = sbr.rel (%p1122) target = $region72
        $region71: #{tpu_custom_call.1} parent=67 // pred_region
          %s1125 = sand.u32 %s186, 1
          %s1126 = scalar_lea.sflag [#allocation4], %s1125
          %s1127 = sand.u32 %s186, 1
          %s1128 = smul.addr %s1127, 16
          %s1129 = scalar_lea.vmem [#allocation8], %s1128
          %1130 = dma.done %s1126, 256
        $region72: #{tpu_custom_call.1} parent=67 // pred_fallthru
          _
      $region68: #{tpu_custom_call.1} parent=5 // pred_fallthru
        _
    $region6: #{tpu_custom_call.1} parent=1 // loop_footer
      %s24 = sadd.s32 1, %s20
    $region7: #{tpu_custom_call.1} parent=1 // loop_footer_branch
      %19 = sbr.rel target = $region3
    $region8: #{tpu_custom_call.1} parent=1 // loop_exit
      _
    %1131 = vsyncpa [#allocation3], 1
    %s1132 = scalar_lea.sflag [#allocation3], 1
    %1133 = vsyncpa %s1132, 1
    %1134 = vsyncpa [#allocation6], 1
    %1135 = vsyncpa [#allocation4], 1
    %s1136 = scalar_lea.sflag [#allocation4], 1
    %1137 = vsyncpa %s1136, 1

</llo_original>
